<compile_context>
chip_gen: v6e
topology: v6e:2x2x1
jax: 0.10.0
libtpu: 0.0.40
codegen_flags: <defaults>
</compile_context>

<pallas_src>
import functools

import jax
import jax.numpy as jnp
from jax import lax
from jax.experimental import pallas as pl
from jax.experimental.pallas import tpu as pltpu

_LANE = 128
_TARGET_TILE_BYTES = 2 * 1024 * 1024    # ~2 MiB feature blocks saturate HBM
_MAX_TK = 8192                          # lane cap per feature block
_MIN_K_STEPS = 8                        # keep the reduction grid pipelinable
_VMEM_BUDGET = 24 * 1024 * 1024         # conservative working-set budget (v7x: 64 MiB/TC)
_VMEM_LIMIT_BYTES = 32 * 1024 * 1024    # explicit scoped-VMEM limit, safe on v5e..v7x


def _cdiv(a, b):
    return -(-a // b)


def _round_up(n, m):
    return _cdiv(n, m) * m


def _sublane(dtype):
    # sublane multiple: 8 rows for f32, 16 for bf16, 32 for int8/fp8
    return max(8, 32 // jnp.dtype(dtype).itemsize)


def _choose_k_tiling(K, Mp, itemsize, fixed_vmem_bytes, allow_split):
    """Pick (tk, nk, nsplit): lane-aligned K tile, #K blocks, #parallel splits."""
    if K <= _LANE:
        return K, 1, 1                      # single full-width block
    tk = (_TARGET_TILE_BYTES // (Mp * itemsize)) // _LANE * _LANE
    # VMEM guard: double-buffered feature block + resident Gram-sized buffers.
    avail = max(_VMEM_BUDGET - fixed_vmem_bytes, 2 * Mp * _LANE * itemsize)
    tk = min(tk, (avail // (2 * Mp * itemsize)) // _LANE * _LANE)
    tk = min(tk, _MAX_TK, _round_up(_cdiv(K, _MIN_K_STEPS), _LANE))
    tk = max(tk, _LANE)
    if tk >= K:
        return K, 1, 1
    nk = _cdiv(K, tk)
    nsplit = 1
    if allow_split and nk >= 4:
        if nk % 2:
            # nudge tk so the K blocks split evenly across two cores (v7x)
            tk2 = max(_LANE, _round_up(_cdiv(K, nk + 1), _LANE))
            if tk2 < K and _cdiv(K, tk2) % 2 == 0:
                tk = tk2
                nk = _cdiv(K, tk)
        if nk % 2 == 0:
            nsplit = 2
    return tk, nk, nsplit


# ---------------------------------------------------------------------------
# Kernels
# ---------------------------------------------------------------------------

def _ff_t(f, mxu_dtype):
    """F_blk @ F_blk^T on the MXU with f32 accumulation (no explicit transpose)."""
    if mxu_dtype is not None and f.dtype != mxu_dtype:
        f = f.astype(mxu_dtype)
    return lax.dot_general(
        f, f,
        dimension_numbers=(((1,), (1,)), ((), ())),
        preferred_element_type=jnp.float32,
    )


def _accumulate(f_ref, acc_ref, g_blk, *, k_true, tk, mxu_dtype):
    """acc += F_blk @ F_blk^T.  If K is not a multiple of tk (static check),
    the ragged last K tile's out-of-bounds lanes (unspecified data) are
    zero-masked before the matmul so they contribute nothing."""
    if k_true % tk == 0:
        acc_ref[...] += _ff_t(f_ref[...], mxu_dtype)
        return

    nk_total = _cdiv(k_true, tk)
    is_ragged = g_blk == nk_total - 1

    @pl.when(jnp.logical_not(is_ragged))
    def _full():
        acc_ref[...] += _ff_t(f_ref[...], mxu_dtype)

    @pl.when(is_ragged)
    def _ragged():
        col = lax.broadcasted_iota(jnp.int32, f_ref.shape, 1) + g_blk * tk
        f = jnp.where(col < k_true, f_ref[...], 0).astype(f_ref.dtype)
        acc_ref[...] += _ff_t(f, mxu_dtype)


def _gram_kernel(f_ref, g_ref, *, inv_norm, k_true, tk, mxu_dtype):
    """grid = (nsplit, nkps).  Axis 0 splits the K reduction ("parallel", v7x
    megacore); axis 1 walks this split's K tiles ("arbitrary").  g_ref is the
    VMEM-resident (Mp, Mp) f32 partial-Gram output block of the current split."""
    s = pl.program_id(0)
    k = pl.program_id(1)
    nkps = pl.num_programs(1)
    g_blk = s * nkps + k                          # global K-block index

    @pl.when(k == 0)
    def _init():
        g_ref[...] = jnp.zeros_like(g_ref)

    _accumulate(f_ref, g_ref, g_blk, k_true=k_true, tk=tk, mxu_dtype=mxu_dtype)

    @pl.when(k == nkps - 1)
    def _finalize():
        g_ref[...] = g_ref[...] * inv_norm


def _loss_kernel(f_ref, tgt_hbm, loss_ref, g_acc, tgt_vmem, tgt_sem, *,
                 inv_norm, inv_mm, k_true, tk, mxu_dtype):
    """Loss-only path: Gram accumulates in VMEM scratch (no HBM writeback of G);
    the target Gram is DMA'd once from HBM (pl.ANY input) into a single VMEM
    buffer, overlapping the whole K reduction; MSE goes to a (1,1) SMEM scalar."""
    k = pl.program_id(0)
    nk = pl.num_programs(0)

    @pl.when(k == 0)
    def _init():
        g_acc[...] = jnp.zeros_like(g_acc)
        pltpu.make_async_copy(tgt_hbm, tgt_vmem, tgt_sem).start()

    _accumulate(f_ref, g_acc, k, k_true=k_true, tk=tk, mxu_dtype=mxu_dtype)

    @pl.when(k == nk - 1)
    def _finalize():
        pltpu.make_async_copy(tgt_hbm, tgt_vmem, tgt_sem).wait()
        diff = g_acc[...] * inv_norm - tgt_vmem[...]
        loss_ref[0, 0] = jnp.sum(diff * diff) * inv_mm


# ---------------------------------------------------------------------------
# Wrappers
# ---------------------------------------------------------------------------

def _features(x):
    """NCHW -> (Mp, K) feature matrix in the input's native dtype.

    K (= c*d) is never padded (the ragged last K tile is masked in-kernel);
    M (= a*b) is padded only to the dtype's sublane multiple and only when
    needed, so the common aligned case is a free reshape (no HBM pad copy)."""
    a, b, c, d = x.shape
    M, K = a * b, c * d
    feats = x.reshape(M, K)
    Mp = _round_up(M, _sublane(x.dtype))
    if Mp != M:
        feats = jnp.pad(feats, ((0, Mp - M), (0, 0)))
    return feats, M, Mp


def _gram_padded(feats, norm, mxu_dtype=None):
    """Normalized Gram matrix (Mp, Mp) f32 of the (Mp, K) feature matrix."""
    Mp, K = feats.shape
    item = jnp.dtype(feats.dtype).itemsize
    tk, nk, nsplit = _choose_k_tiling(K, Mp, item,
                                      fixed_vmem_bytes=2 * Mp * Mp * 4,
                                      allow_split=True)
    nkps = nk // nsplit
    kernel = functools.partial(_gram_kernel, inv_norm=float(1.0 / norm),
                               k_true=K, tk=tk, mxu_dtype=mxu_dtype)
    partials = pl.pallas_call(
        kernel,
        out_shape=jax.ShapeDtypeStruct((nsplit, Mp, Mp), jnp.float32),
        grid_spec=pltpu.PrefetchScalarGridSpec(
            num_scalar_prefetch=0,
            grid=(nsplit, nkps),
            in_specs=[pl.BlockSpec((Mp, tk), lambda s, k: (0, s * nkps + k))],
            out_specs=pl.BlockSpec((None, Mp, Mp), lambda s, k: (s, 0, 0)),
        ),
        compiler_params=pltpu.CompilerParams(
            dimension_semantics=("parallel", "arbitrary"),
            vmem_limit_bytes=_VMEM_LIMIT_BYTES,
        ),
        cost_estimate=pl.CostEstimate(
            flops=2 * Mp * Mp * K,
            transcendentals=0,
            bytes_accessed=Mp * K * item + nsplit * Mp * Mp * 4,
        ),
    )(feats)
    return partials[0] if nsplit == 1 else partials.sum(axis=0)


def _loss_padded(feats, target_gram_p, true_M, norm, mxu_dtype=None):
    """Scalar MSE between gram(feats)/norm and the (padded) target Gram."""
    Mp, K = feats.shape
    item = jnp.dtype(feats.dtype).itemsize
    tk, nk, _ = _choose_k_tiling(K, Mp, item,
                                 fixed_vmem_bytes=2 * Mp * Mp * 4,
                                 allow_split=False)
    kernel = functools.partial(
        _loss_kernel,
        inv_norm=float(1.0 / norm),
        inv_mm=float(1.0 / (true_M * true_M)),
        k_true=K, tk=tk, mxu_dtype=mxu_dtype)
    loss = pl.pallas_call(
        kernel,
        out_shape=jax.ShapeDtypeStruct((1, 1), jnp.float32),
        grid_spec=pltpu.PrefetchScalarGridSpec(
            num_scalar_prefetch=0,
            grid=(nk,),
            in_specs=[
                pl.BlockSpec((Mp, tk), lambda k: (0, k)),
                pl.BlockSpec(memory_space=pl.ANY),        # target Gram stays in HBM
            ],
            out_specs=pl.BlockSpec(memory_space=pltpu.MemorySpace.SMEM),
            scratch_shapes=[
                pltpu.VMEM((Mp, Mp), jnp.float32),        # Gram accumulator
                pltpu.VMEM((Mp, Mp), jnp.float32),        # target landing buffer
                pltpu.SemaphoreType.DMA,
            ],
        ),
        compiler_params=pltpu.CompilerParams(
            dimension_semantics=("arbitrary",),
            vmem_limit_bytes=_VMEM_LIMIT_BYTES,
        ),
        cost_estimate=pl.CostEstimate(
            flops=2 * Mp * Mp * K,
            transcendentals=0,
            bytes_accessed=Mp * K * item + Mp * Mp * 4 + 4,
        ),
    )(feats, target_gram_p)
    return loss[0, 0]


def gram_matrix(x, mxu_dtype=None):
    """x: (a, b, c, d) NCHW -> Gram matrix (a*b, a*b) divided by a*b*c*d."""
    a, b, c, d = x.shape
    feats, M, Mp = _features(x)
    G = _gram_padded(feats, a * b * c * d, mxu_dtype)
    return G[:M, :M] if Mp != M else G


class StyleLoss:
    """JAX/Pallas port of the PyTorch StyleLoss module (forward pass)."""

    def __init__(self, target_feature, mxu_dtype=None):
        a, b, c, d = target_feature.shape
        feats, M, Mp = _features(target_feature)
        self._M = M
        self._mxu_dtype = mxu_dtype
        # Target Gram, computed once ("detached").  Padded rows/cols (if any)
        # are exactly zero, so they contribute 0 to the loss.
        self._target_p = _gram_padded(feats, a * b * c * d, mxu_dtype)
        self.target = self._target_p[:M, :M] if Mp != M else self._target_p
        self.loss = None

    def __call__(self, x):
        a, b, c, d = x.shape
        feats, M, Mp = _features(x)
        if M != self._M:
            raise ValueError("a*b of the input must match the target feature")
        tgt = self._target_p
        if tgt.shape[0] != Mp:     # e.g. a different input dtype -> different sublane pad
            tgt = jnp.pad(self.target, ((0, Mp - M), (0, Mp - M)))
        self.loss = _loss_padded(feats, tgt, M, a * b * c * d, self._mxu_dtype)
        return x  # module passes its input through unchanged


# ---------------------------------------------------------------------------
# Pure-JAX references and self-test
# ---------------------------------------------------------------------------

def _reference_gram(x):
    a, b, c, d = x.shape
    f = x.reshape(a * b, c * d).astype(jnp.float32)
    return (f @ f.T) / (a * b * c * d)


def _reference_loss(x, target_feature):
    G = _reference_gram(x)
    Gt = _reference_gram(target_feature)
    return jnp.mean((G - Gt) ** 2)


if __name__ == "__main__":
    key = jax.random.PRNGKey(0)

    test_shapes = [
        (2, 4, 16, 16),   # aligned: M = 8, K = 256
        (1, 3, 10, 13),   # M padded 3 -> 8 (sublane), ragged K tile (K = 130)
        (2, 4, 25, 40),   # K = 1000 -> 8 K blocks, 2-way K split, ragged last tile
    ]
    for shape in test_shapes:
        key, k1, k2 = jax.random.split(key, 3)
        target_feature = jax.random.normal(k1, shape, dtype=jnp.float32)
        x = jax.random.normal(k2, shape, dtype=jnp.float32)

        module = StyleLoss(target_feature)
        out = jax.block_until_ready(module(x))
        loss = jax.block_until_ready(module.loss)
        G_kernel = jax.block_until_ready(gram_matrix(x))

        ref_loss = _reference_loss(x, target_feature)
        ref_Gt = _reference_gram(target_feature)
        ref_Gx = _reference_gram(x)

        assert jnp.allclose(out, x), ("forward must return its input unchanged", shape)
        assert jnp.allclose(module.target, ref_Gt, rtol=1e-5, atol=1e-5), ("target Gram", shape)
        assert jnp.allclose(G_kernel, ref_Gx, rtol=1e-5, atol=1e-5), ("input Gram", shape)
        assert jnp.allclose(loss, ref_loss, rtol=1e-5, atol=1e-6), (shape, loss, ref_loss)

    print("KERNEL_OK")
</pallas_src>

<mosaic_0001>
module attributes {stable_mosaic.version = 11 : i64} {
  func.func @_gram_kernel(%arg0: i32, %arg1: i32, %arg2: memref<8x128xf32, #tpu.memory_space<vmem>>, %arg3: memref<1x8x8xf32, #tpu.memory_space<vmem>>) attributes {dimension_semantics = [#tpu.dimension_semantics<parallel>, #tpu.dimension_semantics<arbitrary>], iteration_bounds = array<i64: 1, 2>, scalar_prefetch = 0 : i64, scratch_operands = 0 : i64, tpu.core_type = #tpu.core_type<tc>, window_params = [{transform_indices = @transform_0, window_bounds = array<i64: 8, 128>}, {transform_indices = @transform_1, window_bounds = array<i64: 1, 8, 8>}]} {
    %c0_i32 = arith.constant 0 : i32
    %0 = arith.cmpi eq, %arg1, %c0_i32 : i32
    %1 = arith.extui %0 : i1 to i32
    %c0_i32_0 = arith.constant 0 : i32
    %2 = arith.cmpi ne, %1, %c0_i32_0 : i32
    scf.if %2 {
      %cst_9 = arith.constant 0.000000e+00 : f32
      %14 = vector.broadcast %cst_9 : f32 to vector<8x8xf32>
      %c0_10 = arith.constant 0 : index
      %c0_11 = arith.constant 0 : index
      %c0_12 = arith.constant 0 : index
      %15 = vector.load %arg3[%c0_10, %c0_11, %c0_12] : memref<1x8x8xf32, #tpu.memory_space<vmem>>, vector<1x8x8xf32>
      %16 = vector.shape_cast %15 : vector<1x8x8xf32> to vector<8x8xf32>
      %17 = vector.shape_cast %14 : vector<8x8xf32> to vector<1x8x8xf32>
      tpu.vector_store %arg3[%c0_10, %c0_11, %c0_12], %17 {strides = array<i32>} : memref<1x8x8xf32, #tpu.memory_space<vmem>>, vector<1x8x8xf32>,
    } else {
    }
    %c0 = arith.constant 0 : index
    %c0_1 = arith.constant 0 : index
    %c0_2 = arith.constant 0 : index
    %3 = vector.load %arg3[%c0, %c0_1, %c0_2] : memref<1x8x8xf32, #tpu.memory_space<vmem>>, vector<1x8x8xf32>
    %4 = vector.shape_cast %3 : vector<1x8x8xf32> to vector<8x8xf32>
    %c0_3 = arith.constant 0 : index
    %c0_4 = arith.constant 0 : index
    %5 = vector.load %arg2[%c0_3, %c0_4] : memref<8x128xf32, #tpu.memory_space<vmem>>, vector<8x128xf32>
    %cst = arith.constant dense<0.000000e+00> : vector<8x8xf32>
    %6 = tpu.matmul %5, %5, %cst {dimension_numbers = #tpu.dot_dimension_numbers<[1], [1], [0], [0], [0, 0, 1, 0], [], []>} : vector<8x128xf32>, vector<8x128xf32>, vector<8x8xf32> -> vector<8x8xf32>
    %7 = arith.addf %4, %6 : vector<8x8xf32>
    %c0_5 = arith.constant 0 : index
    %c0_6 = arith.constant 0 : index
    %c0_7 = arith.constant 0 : index
    %8 = vector.load %arg3[%c0_5, %c0_6, %c0_7] : memref<1x8x8xf32, #tpu.memory_space<vmem>>, vector<1x8x8xf32>
    %9 = vector.shape_cast %8 : vector<1x8x8xf32> to vector<8x8xf32>
    %10 = vector.shape_cast %7 : vector<8x8xf32> to vector<1x8x8xf32>
    tpu.vector_store %arg3[%c0_5, %c0_6, %c0_7], %10 {strides = array<i32>} : memref<1x8x8xf32, #tpu.memory_space<vmem>>, vector<1x8x8xf32>,
    %c1_i32 = arith.constant 1 : i32
    %11 = arith.cmpi eq, %arg1, %c1_i32 : i32
    %12 = arith.extui %11 : i1 to i32
    %c0_i32_8 = arith.constant 0 : i32
    %13 = arith.cmpi ne, %12, %c0_i32_8 : i32
    scf.if %13 {
      %c0_9 = arith.constant 0 : index
      %c0_10 = arith.constant 0 : index
      %c0_11 = arith.constant 0 : index
      %14 = vector.load %arg3[%c0_9, %c0_10, %c0_11] : memref<1x8x8xf32, #tpu.memory_space<vmem>>, vector<1x8x8xf32>
      %15 = vector.shape_cast %14 : vector<1x8x8xf32> to vector<8x8xf32>
      %cst_12 = arith.constant 4.8828125E-4 : f32
      %16 = vector.broadcast %cst_12 : f32 to vector<8x8xf32>
      %17 = arith.mulf %15, %16 : vector<8x8xf32>
      %c0_13 = arith.constant 0 : index
      %c0_14 = arith.constant 0 : index
      %c0_15 = arith.constant 0 : index
      %18 = vector.load %arg3[%c0_13, %c0_14, %c0_15] : memref<1x8x8xf32, #tpu.memory_space<vmem>>, vector<1x8x8xf32>
      %19 = vector.shape_cast %18 : vector<1x8x8xf32> to vector<8x8xf32>
      %20 = vector.shape_cast %17 : vector<8x8xf32> to vector<1x8x8xf32>
      tpu.vector_store %arg3[%c0_13, %c0_14, %c0_15], %20 {strides = array<i32>} : memref<1x8x8xf32, #tpu.memory_space<vmem>>, vector<1x8x8xf32>,
    } else {
    }
    return
  }
  func.func @transform_0(%arg0: i32, %arg1: i32) -> (i32, i32) {
    %c2_i32 = arith.constant 2 : i32
    %0 = arith.muli %arg0, %c2_i32 : i32
    %1 = arith.addi %0, %arg1 : i32
    %c0_i32 = arith.constant 0 : i32
    %c0_i32_0 = arith.constant 0 : i32
    return %c0_i32, %1 : i32, i32
  }
  func.func @transform_1(%arg0: i32, %arg1: i32) -> (i32, i32, i32) {
    %c0_i32 = arith.constant 0 : i32
    %c0_i32_0 = arith.constant 0 : i32
    %c0_i32_1 = arith.constant 0 : i32
    return %arg0, %c0_i32, %c0_i32_0 : i32, i32, i32
  }
}

</mosaic_0001>

<llo_original>
// kernel: tpu_custom_call.1
$region0: #{tpu_custom_call.1}
  #allocation0 [shape = 'u32[]', space=smem, size = 0x4, offset = 0x4, fixed_abs, tag = 'smem constant byte address 0x4 - core index']
  #allocation1 [shape = 'u32[144,128]{1,0:T(1,128)}', space=vmem, size = 0x12000, scoped, tag = 'internal scratch']
  %s0 = inlined_call_operand.hbm [shape: f32[8,256], index: 0, kind: input, shape index: {}]
  %s1 = inlined_call_operand.hbm [shape: f32[1,8,8], index: 1, kind: output, shape index: {}]
  %s2 = sld [smem:[#allocation0]]
  $region49: #{tpu_custom_call.1} parent=0
    _
  %s4 = ssub.s32 1, %s2
  %s5 = scalar_select 0, %s4, %s2
  $region1: #{tpu_custom_call.1} parent=0
    #allocation2 [shape = 'u8[8192]{0}', space=vmem, size = 0x2000, scoped, tag = 'input window, operand 0']
    #allocation3 [shape = 's32[2]{0}', space=sflag, size = 0x8, scoped, tag = 'scoped memory for tpu_custom_call.1']
    #allocation4 [shape = 's32[2]{0}', space=sflag, size = 0x8, scoped, tag = 'scoped memory for tpu_custom_call.1']
    #allocation5 [shape = 'u8[4096]{0}', space=vmem, size = 0x1000, scoped, tag = 'output window, operand 0, single buffered']
    %6 = vsyncpa [#allocation3], 0
    %s7 = scalar_lea.sflag [#allocation3], 1
    %8 = vsyncpa %s7, 0
    %9 = vsyncpa [#allocation4], 0
    loop: start=0, step=1, limit=4
    $region2: #{tpu_custom_call.1} parent=1 // loop_pre_header
      _
    $region3: #{tpu_custom_call.1} parent=1 // loop_header
      %s11 = sphi 0, %s15
      %p12 = scmp.ge.s32.totalorder %s11, 4
      %s18 = sphi 0, %s30
      %s19 = sphi 0, %s26
      %s20 = sphi 0, %s18
      %s21 = sphi 0, %s19
      %s22 = sphi 0, %s20
      %s23 = sphi 0, %s21
      %s37 = sphi 0, %s39
      %s40 = sphi 0, %s37
      %s41 = sphi 0, %s40
      %s57 = sphi 0, %s41
      %s63 = sphi 0, %s65
      %s66 = sphi 0, %s63
      %s67 = sphi 0, %s66
      %s83 = sphi 0, %s67
    $region4: #{tpu_custom_call.1} parent=1 // loop_header_branch
      %14 = sbr.rel (%p12) target = $region8
    $region5: #{tpu_custom_call.1} parent=1 // loop_body
      %s16 = ssub.s32 %s11, 1
      %s17 = ssub.s32 %s11, 2
      %s24 = sadd.s32 1, %s19
      %p25 = scmp.ge.s32.totalorder %s24, 2
      %s26 = scalar_select %p25, 0, %s24
      %s27 = sadd.s32 1, %s18
      %s28 = scalar_select %p25, %s27, %s18
      %p29 = scmp.ge.s32.totalorder %s28, 1
      %s30 = scalar_select %p29, 0, %s28
      %s31 = smul.u32 %s18, 2
      %s32 = sadd.s32 %s31, %s19
      %s33 = smul.u32 %s30, 2
      %s34 = sadd.s32 %s33, %s26
      %s35 = ssub.s32 %s32, %s34
      %p36 = scmp.eq.s32.totalorder %s35, 0
      %s38 = sadd.s32 %s37, 1
      %s39 = scalar_select %p36, %s37, %s38
      %p42 = pneg %p36
      %p43 = scmp.eq.s32.totalorder %s11, 1
      %p44 = por %p42, %p43
      %p45 = scmp.ne.s32.totalorder %s37, %s40
      %p46 = scmp.eq.s32.totalorder %s11, 0
      %p47 = por %p45, %p46
      %p48 = scmp.ne.s32.totalorder %s37, %s40
      %p49 = scmp.eq.s32.totalorder %s16, 1
      %p50 = por %p48, %p49
      %p51 = scmp.ne.s32.totalorder %s40, %s41
      %p52 = scmp.eq.s32.totalorder %s16, 0
      %p53 = por %p51, %p52
      %p54 = scmp.ne.s32.totalorder %s40, %s41
      %p55 = scmp.eq.s32.totalorder %s17, 1
      %p56 = por %p54, %p55
      %p58 = scmp.ne.s32.totalorder %s41, %s57
      %p59 = scmp.eq.s32.totalorder %s17, 0
      %p60 = por %p58, %p59
      %s61 = ssub.s32 %s18, %s30
      %p62 = scmp.eq.s32.totalorder %s61, 0
      %s64 = sadd.s32 %s63, 1
      %s65 = scalar_select %p62, %s63, %s64
      %p68 = pneg %p62
      %p69 = scmp.eq.s32.totalorder %s11, 1
      %p70 = por %p68, %p69
      %p71 = scmp.ne.s32.totalorder %s63, %s66
      %p72 = scmp.eq.s32.totalorder %s11, 0
      %p73 = por %p71, %p72
      %p74 = scmp.ne.s32.totalorder %s63, %s66
      %p75 = scmp.eq.s32.totalorder %s16, 1
      %p76 = por %p74, %p75
      %p77 = scmp.ne.s32.totalorder %s66, %s67
      %p78 = scmp.eq.s32.totalorder %s16, 0
      %p79 = por %p77, %p78
      %p80 = scmp.ne.s32.totalorder %s66, %s67
      %p81 = scmp.eq.s32.totalorder %s17, 1
      %p82 = por %p80, %p81
      %p84 = scmp.ne.s32.totalorder %s67, %s83
      %p85 = scmp.eq.s32.totalorder %s17, 0
      %p86 = por %p84, %p85
      %p87 = scmp.le.s32.totalorder 1, %s11
      %p88 = scmp.lt.s32.totalorder %s11, 3
      %p89 = pnand %p87, %p88
      %p90 = pneg %p89
      // Predicated region
      $region9: #{tpu_custom_call.1} parent=5 // pred_check
        _
      $region10: #{tpu_custom_call.1} parent=5 // pred_check_branch
        %92 = sbr.rel (%p89) target = $region12
      $region11: #{tpu_custom_call.1} parent=5 // pred_region
        %s93 = ssub.s32 %s11, 1
      $region12: #{tpu_custom_call.1} parent=5 // pred_fallthru
        _
      %p94 = scmp.lt.s32.totalorder %s11, 2
      // Predicated region
      $region13: #{tpu_custom_call.1} parent=5 // pred_check
        %p95 = pneg %p94
      $region14: #{tpu_custom_call.1} parent=5 // pred_check_branch
        %97 = sbr.rel (%p95) target = $region16
      $region15: #{tpu_custom_call.1} parent=5 // pred_region
        // Predicated region
        $region17: #{tpu_custom_call.1} parent=15 // pred_check
          %p98 = pneg %p47
        $region18: #{tpu_custom_call.1} parent=15 // pred_check_branch
          %100 = sbr.rel (%p98) target = $region20
        $region19: #{tpu_custom_call.1} parent=15 // pred_region
          %s101 = sand.u32 %s37, 1
          %s102 = scalar_lea.sflag [#allocation3], %s101
          %s103 = sand.u32 %s37, 1
          %s104 = smul.addr %s103, 8
          %s105 = scalar_lea.vmem [#allocation2], %s104
          %s106 = smul.u32 %s18, 2
          %s107 = sadd.s32 %s106, %s19
          %s109 = ssub.s32 128, 128
          %110 = vsyncadd %s102, %s109
          %s111 = smul.addr %s107, 128
          %s112 = scalar_lea.hbm %s0, %s111
          %s114 = sshll.u32 %s105, 4
          %s115 = int_to_ptr.vmem [resolvable:$true] %s114
          %117 = dma.hbm_to_vmem [thread:$0]  %s112, 128, %s115, %s102
        $region20: #{tpu_custom_call.1} parent=15 // pred_fallthru
          _
      $region16: #{tpu_custom_call.1} parent=5 // pred_fallthru
        _
      %p118 = scmp.le.s32.totalorder 1, %s11
      %p119 = scmp.lt.s32.totalorder %s11, 3
      %p120 = pnand %p118, %p119
      %p121 = pneg %p120
      // Predicated region
      $region21: #{tpu_custom_call.1} parent=5 // pred_check
        _
      $region22: #{tpu_custom_call.1} parent=5 // pred_check_branch
        %123 = sbr.rel (%p120) target = $region24
      $region23: #{tpu_custom_call.1} parent=5 // pred_region
        %s124 = ssub.s32 %s11, 1
        %s125 = sand.u32 %s40, 1
        %s126 = scalar_lea.sflag [#allocation3], %s125
        %s127 = sand.u32 %s40, 1
        %s128 = smul.addr %s127, 8
        %s129 = scalar_lea.vmem [#allocation2], %s128
        // Predicated region
        $region25: #{tpu_custom_call.1} parent=23 // pred_check
          %p130 = pneg %p53
        $region26: #{tpu_custom_call.1} parent=23 // pred_check_branch
          %132 = sbr.rel (%p130) target = $region28
        $region27: #{tpu_custom_call.1} parent=23 // pred_region
          %133 = dma.done %s126, 128
        $region28: #{tpu_custom_call.1} parent=23 // pred_fallthru
          _
        %s134 = sand.u32 %s40, 1
        %s135 = scalar_lea.sflag [#allocation3], %s134
        %s136 = sand.u32 %s40, 1
        %s137 = smul.addr %s136, 8
        %s138 = scalar_lea.vmem [#allocation2], %s137
        %p139 = pneg %p53
        %p140 = pneg %p50
        %p141 = pneg %p79
        %p142 = pneg %p76
        %s143 = smul.u32 %s20, 2
        %s144 = sadd.s32 %s143, %s21
        %p145 = scmp.eq.s32.totalorder %s21, 0
        // Predicated region
        $region29: #{tpu_custom_call.1} parent=23 // pred_check
          %p146 = pneg %p145
        $region30: #{tpu_custom_call.1} parent=23 // pred_check_branch
          %148 = sbr.rel (%p146) target = $region32
        $region31: #{tpu_custom_call.1} parent=23 // pred_region
          %vm149 = vcmask 64512
          %150 = vst.msk [vmem:[#allocation5] sm:$0xff] %vm149, 0.0
        $region32: #{tpu_custom_call.1} parent=23 // pred_fallthru
          _
        %v151 = vld [vmem:[#allocation5] sm:$0xff]
        %v152 = vld [vmem:[%s129] sm:$0xff]
        %153 = vmatprep.subr.mxu0 0.0
        %154 = vmatpush1.xpose.msra.mxu0 0.0
        %155 = vmatprep.subr.mxu0 0.0
        %156 = vmatpush1.xpose.msra.mxu0 0.0
        %157 = vmatprep.subr.mxu0 0.0
        %158 = vmatpush1.xpose.msra.mxu0 0.0
        %159 = vmatprep.subr.mxu0 0.0
        %160 = vmatpush1.xpose.msra.mxu0 0.0
        %161 = vmatprep.subr.mxu0 0.0
        %162 = vmatpush1.xpose.msra.mxu0 0.0
        %163 = vmatprep.subr.mxu0 0.0
        %164 = vmatpush1.xpose.msra.mxu0 0.0
        %165 = vmatprep.subr.mxu0 0.0
        %166 = vmatpush1.xpose.msra.mxu0 0.0
        %167 = vmatprep.subr.mxu0 0.0
        %168 = vmatpush1.xpose.msra.mxu0 0.0
        %169 = vmatprep.subr.mxu0 0.0
        %170 = vmatpush1.xpose.msra.mxu0 0.0
        %171 = vmatprep.subr.mxu0 0.0
        %172 = vmatpush1.xpose.msra.mxu0 0.0
        %173 = vmatprep.subr.mxu0 0.0
        %174 = vmatpush1.xpose.msra.mxu0 0.0
        %175 = vmatprep.subr.mxu0 0.0
        %176 = vmatpush1.xpose.msra.mxu0 0.0
        %177 = vmatprep.subr.mxu0 0.0
        %178 = vmatpush1.xpose.msra.mxu0 0.0
        %179 = vmatprep.subr.mxu0 0.0
        %180 = vmatpush1.xpose.msra.mxu0 0.0
        %181 = vmatprep.subr.mxu0 0.0
        %182 = vmatpush1.xpose.msra.mxu0 0.0
        %183 = vmatprep.subr.mxu0 0.0
        %184 = vmatpush1.xpose.msra.mxu0 %v152
        %185 = vmatprep.subr.mxu0 0.0
        %186 = vmatpush2.xpose.msra.mxu0 0.0
        %187 = vmatprep.subr.mxu0 0.0
        %188 = vmatpush2.xpose.msra.mxu0 0.0
        %189 = vmatprep.subr.mxu0 0.0
        %190 = vmatpush2.xpose.msra.mxu0 0.0
        %191 = vmatprep.subr.mxu0 0.0
        %192 = vmatpush2.xpose.msra.mxu0 0.0
        %193 = vmatprep.subr.mxu0 0.0
        %194 = vmatpush2.xpose.msra.mxu0 0.0
        %195 = vmatprep.subr.mxu0 0.0
        %196 = vmatpush2.xpose.msra.mxu0 0.0
        %197 = vmatprep.subr.mxu0 0.0
        %198 = vmatpush2.xpose.msra.mxu0 0.0
        %199 = vmatprep.subr.mxu0 0.0
        %200 = vmatpush2.xpose.msra.mxu0 0.0
        %201 = vmatprep.subr.mxu0 0.0
        %202 = vmatpush2.xpose.msra.mxu0 0.0
        %203 = vmatprep.subr.mxu0 0.0
        %204 = vmatpush2.xpose.msra.mxu0 0.0
        %205 = vmatprep.subr.mxu0 0.0
        %206 = vmatpush2.xpose.msra.mxu0 0.0
        %207 = vmatprep.subr.mxu0 0.0
        %208 = vmatpush2.xpose.msra.mxu0 0.0
        %209 = vmatprep.subr.mxu0 0.0
        %210 = vmatpush2.xpose.msra.mxu0 0.0
        %211 = vmatprep.subr.mxu0 0.0
        %212 = vmatpush2.xpose.msra.mxu0 0.0
        %213 = vmatprep.subr.mxu0 0.0
        %214 = vmatpush2.xpose.msra.mxu0 0.0
        %215 = vmatprep.subr.mxu0 0.0
        %216 = vmatpush2.xpose.msra.mxu0 0.0
        %217 = vmatprep.mubr.f32.mxu0 0.0
        %218 = vmatmul.mubr.f32.gmra.mxu0 %v152
        %v219 = vpop.f32.mrf.mxu0
        %v220 = vadd.f32 0.0, %v219
        %v221 = vpop.f32.mrf.mxu0
        %222 = vdwg.mxu0
        %v223 = vadd.f32 %v151, %v220
        %vm224 = vcmask 64512
        %225 = vst.msk [vmem:[#allocation5] sm:$0xff] %vm224, %v223
        %p226 = scmp.eq.s32.totalorder %s21, 1
        // Predicated region
        $region33: #{tpu_custom_call.1} parent=23 // pred_check
          %p227 = pneg %p226
        $region34: #{tpu_custom_call.1} parent=23 // pred_check_branch
          %229 = sbr.rel (%p227) target = $region36
        $region35: #{tpu_custom_call.1} parent=23 // pred_region
          %v230 = vld [vmem:[#allocation5] sm:$0xff]
          %v231 = vmul.f32 %v230, 0.00048828125
          %232 = vst.msk [vmem:[#allocation5] sm:$0xff] %vm224, %v231
        $region36: #{tpu_custom_call.1} parent=23 // pred_fallthru
          _
        // Predicated region
        $region37: #{tpu_custom_call.1} parent=23 // pred_check
          %p233 = pneg %p76
        $region38: #{tpu_custom_call.1} parent=23 // pred_check_branch
          %235 = sbr.rel (%p233) target = $region40
        $region39: #{tpu_custom_call.1} parent=23 // pred_region
          %s237 = ssub.s32 128, 128
          %238 = vsyncadd [#allocation4], %s237
          %s239 = smul.addr %s20, 128
          %s240 = scalar_lea.hbm %s1, %s239
          %s242 = sshll.u32 [#allocation5], 4
          %s243 = int_to_ptr.vmem [resolvable:$true] %s242
          %245 = dma.vmem_to_hbm [thread:$0]  %s243, 128, %s240, [#allocation4]
        $region40: #{tpu_custom_call.1} parent=23 // pred_fallthru
          _
        // Predicated region
        $region41: #{tpu_custom_call.1} parent=23 // pred_check
          %p246 = pneg %p76
        $region42: #{tpu_custom_call.1} parent=23 // pred_check_branch
          %248 = sbr.rel (%p246) target = $region44
        $region43: #{tpu_custom_call.1} parent=23 // pred_region
          %249 = dma.done [#allocation4], 128
        $region44: #{tpu_custom_call.1} parent=23 // pred_fallthru
          _
      $region24: #{tpu_custom_call.1} parent=5 // pred_fallthru
        _
      %p250 = scmp.le.s32.totalorder 2, %s11
      // Predicated region
      $region45: #{tpu_custom_call.1} parent=5 // pred_check
        %p251 = pneg %p250
      $region46: #{tpu_custom_call.1} parent=5 // pred_check_branch
        %253 = sbr.rel (%p251) target = $region48
      $region47: #{tpu_custom_call.1} parent=5 // pred_region
        %s254 = ssub.s32 %s11, 2
      $region48: #{tpu_custom_call.1} parent=5 // pred_fallthru
        _
    $region6: #{tpu_custom_call.1} parent=1 // loop_footer
      %s15 = sadd.s32 1, %s11
    $region7: #{tpu_custom_call.1} parent=1 // loop_footer_branch
      %10 = sbr.rel target = $region3
    $region8: #{tpu_custom_call.1} parent=1 // loop_exit
      _
    %255 = vsyncpa [#allocation3], 1
    %s256 = scalar_lea.sflag [#allocation3], 1
    %257 = vsyncpa %s256, 1
    %258 = vsyncpa [#allocation4], 1
    %s259 = scalar_lea.sflag [#allocation4], 1
    %260 = vsyncpa %s259, 1

</llo_original>
